<compile_context>
chip_gen: v5e
topology: v5e:2x2
jax: 0.10.0
libtpu: 0.0.40
codegen_flags: <defaults>
</compile_context>

<pallas_src>
import functools

import jax
import jax.numpy as jnp
from jax import lax
from jax.experimental import pallas as pl
from jax.experimental.pallas import tpu as pltpu

EPS = 1e-5  # nn.LayerNorm default eps
_MIB = 1024 * 1024


# --------------------------------------------------------------------------- tiling

def _batch_tile_candidates(B, D, target_lanes):
    """Batch tiles Bt stacked along the lane axis.  A block's last dim must be a
    multiple of 128 or the full (B*D) extent, so legal Bt are divisors of B with
    Bt*D % 128 == 0, plus Bt == B (full extent).  Preference: the largest aligned
    stack under `target_lanes`, then progressively larger (legal, more VMEM)."""
    aligned = [bt for bt in range(B, 0, -1) if B % bt == 0 and (bt * D) % 128 == 0]
    if B not in aligned:
        aligned.append(B)
    within = sorted([bt for bt in aligned if bt * D <= target_lanes], reverse=True)
    over = sorted([bt for bt in aligned if bt * D > target_lanes])
    return within + over


def _row_tile_candidates(N, max_tn):
    """Row tiles (rows of W / u / out).  Prefer the full N (W fetched once,
    grid_n == 1), then MXU-aligned tiles: multiples of 256 (v6e/v7x), then 128
    (v5e), and only then generic multiples of 8."""
    cands = []
    if N <= max_tn:
        cands.append(N)
    for align in (256, 128, 8):
        tn = (min(N, max_tn) // align) * align
        while tn >= align:
            if N % tn == 0 and tn not in cands:
                cands.append(tn)
            tn -= align
    if not cands:
        cands.append(N)  # last resort: full extent is always a legal block
    return cands


def _footprint_bytes(N, D, bt, tn, item, w_item):
    """Honest VMEM estimate: pipeline buffers + vn scratch + in-kernel f32
    temporaries (the review's main v7x concern)."""
    btd = bt * D
    grid_n = N // tn
    fp = 0
    fp += 2 * tn * btd * item                            # u   (double-buffered)
    fp += 2 * tn * btd * item                            # out (double-buffered)
    fp += 1 * N * btd * item                             # v   (single-buffered)
    fp += (1 if grid_n == 1 else 2) * tn * N * w_item    # W
    fp += N * btd * w_item                               # hoisted vn scratch
    fp += 2 * btd * 4 + tn * 128 * 4                     # gamma/beta + padded bias
    fp += 3 * N * btd * 4                                # LN f32 temporaries (upper bound)
    fp += 2 * tn * btd * 4                               # MXU result + gate (f32)
    return fp


def _select_tiles(B, N, D, item, w_item, *, batch_tile, row_tile,
                  target_lanes, max_tn, budget_bytes):
    b_cands = ([batch_tile] if batch_tile is not None
               else _batch_tile_candidates(B, D, target_lanes))
    r_cands = ([row_tile] if row_tile is not None
               else _row_tile_candidates(N, max_tn))
    for bt in b_cands:
        for tn in r_cands:
            if _footprint_bytes(N, D, bt, tn, item, w_item) <= budget_bytes:
                return bt, tn
    # Nothing fits the budget: take the smallest-footprint legal pair.
    return min(((bt, tn) for bt in b_cands for tn in r_cands),
               key=lambda p: _footprint_bytes(N, D, p[0], p[1], item, w_item))


def _spec(shape, index_map, buffer_count=None):
    """BlockSpec with an optional pipeline depth; falls back to the default
    (double-buffered) spec if this JAX build lacks `pipeline_mode`."""
    if buffer_count is not None:
        try:
            return pl.BlockSpec(shape, index_map, pipeline_mode=pl.Buffered(buffer_count))
        except (AttributeError, TypeError):
            pass
    return pl.BlockSpec(shape, index_map)


# --------------------------------------------------------------------------- kernel

def sgu_kernel(u_ref, v_ref, gamma_ref, beta_ref, w_ref, bias_ref, o_ref, vn_ref,
               *, bt, d, use_slices, precision):
    # u_ref / o_ref : (TN, Bt*D)  x-dtype
    # v_ref         : (N,  Bt*D)  x-dtype   (full rows: contraction + LN need them)
    # gamma/beta    : (1,  Bt*D)  f32
    # w_ref         : (TN, N)     MXU dtype
    # bias_ref      : (TN, 1)     f32
    # vn_ref        : (N,  Bt*D)  MXU dtype VMEM scratch (hoisted LayerNorm)

    # --- grouped LayerNorm, hoisted: recompute only at the first row tile of each
    # batch tile; the normalized (MXU-dtype) result is carried across the
    # "arbitrary" j axis in VMEM scratch.
    @pl.when(pl.program_id(1) == 0)
    def _compute_vn():
        if use_slices:
            # Lane-aligned static slices: each group's reductions are D lanes wide
            # and the result goes straight into its scratch slice.
            for b in range(bt):
                lo, hi = b * d, (b + 1) * d
                vb = v_ref[:, lo:hi].astype(jnp.float32)            # (N, D)
                mean = jnp.mean(vb, axis=-1, keepdims=True)         # biased stats (torch)
                c = vb - mean
                var = jnp.mean(c * c, axis=-1, keepdims=True)
                vn_b = (c * lax.rsqrt(var + EPS)
                        * gamma_ref[:, lo:hi] + beta_ref[:, lo:hi])
                vn_ref[:, lo:hi] = vn_b.astype(vn_ref.dtype)
        else:
            # Fallback for D not a multiple of 128: masked full-width reductions.
            v = v_ref[...].astype(jnp.float32)                      # (N, Bt*D)
            lanes = lax.broadcasted_iota(jnp.int32, v.shape, dimension=1)
            inv_d = 1.0 / d
            vn = jnp.zeros_like(v)
            for b in range(bt):                                     # static, small unroll
                mask = (lanes >= b * d) & (lanes < (b + 1) * d)
                vb = jnp.where(mask, v, 0.0)
                mean = jnp.sum(vb, axis=-1, keepdims=True) * inv_d
                c = v - mean
                cb = jnp.where(mask, c, 0.0)
                var = jnp.sum(cb * cb, axis=-1, keepdims=True) * inv_d
                vn = jnp.where(mask, c * lax.rsqrt(var + EPS), vn)
            vn = vn * gamma_ref[...] + beta_ref[...]
            vn_ref[...] = vn.astype(vn_ref.dtype)

    # --- spatial projection on the MXU: (TN, N) @ (N, Bt*D), f32 accumulation.
    s = jnp.dot(w_ref[...], vn_ref[...],
                preferred_element_type=jnp.float32, precision=precision)
    s = s + bias_ref[...]
    # sigmoid(s) == 0.5 * (tanh(0.5*s) + 1): one EUP push per element, no divide.
    g = 0.5 * (jnp.tanh(0.5 * s) + 1.0)
    o_ref[...] = (u_ref[...].astype(jnp.float32) * g).astype(o_ref.dtype)


# --------------------------------------------------------------------------- wrapper

def spatial_gating_unit(x, gamma, beta, w, bias, *,
                        mxu_dtype=jnp.bfloat16, batch_tile=None, row_tile=None,
                        target_lanes=512, max_row_tile=256,
                        vmem_budget_bytes=32 * _MIB):
    """SpatialGatingUnit forward.  x: (B, N, 2*D) -> (B, N, D)."""
    B, N, C = x.shape
    D = C // 2
    assert C == 2 * D, "channel dim must be even"

    item = x.dtype.itemsize
    mxu_dtype = jax.dtypes.canonicalize_dtype(mxu_dtype)
    w_item = mxu_dtype.itemsize

    Bt, TN = _select_tiles(B, N, D, item, w_item,
                           batch_tile=batch_tile, row_tile=row_tile,
                           target_lanes=target_lanes, max_tn=max_row_tile,
                           budget_bytes=vmem_budget_bytes)
    assert B % Bt == 0 and ((Bt * D) % 128 == 0 or Bt == B)
    assert N % TN == 0 and (TN % 8 == 0 or TN == N)
    grid_b, grid_n = B // Bt, N // TN

    # Slice-based LN needs lane-aligned groups (or a single group).
    use_slices = (D % 128 == 0) or (Bt == 1)
    # True f32 MXU passes for the validation path; default (bf16) perf path otherwise.
    precision = lax.Precision.HIGHEST if mxu_dtype == jnp.float32 else None

    # --- glue (plain JAX): chunk, batch-stack along lanes, parameter reshapes.
    # TODO(synk): for D already >= the MXU lane width (128/256) a non-stacked 3-D
    # BlockSpec path would drop these HBM-round-trip transposes entirely.
    u = x[..., :D]
    v = x[..., D:]
    u_s = jnp.transpose(u, (1, 0, 2)).reshape(N, B * D)       # lane index = b*D + d
    v_s = jnp.transpose(v, (1, 0, 2)).reshape(N, B * D)
    gamma_t = jnp.tile(gamma.reshape(1, D).astype(jnp.float32), (1, Bt))   # (1, Bt*D)
    beta_t = jnp.tile(beta.reshape(1, D).astype(jnp.float32), (1, Bt))
    w_mxu = w.astype(mxu_dtype)                               # (N, N)
    bias2 = bias.reshape(N, 1).astype(jnp.float32)

    fp = _footprint_bytes(N, D, Bt, TN, item, w_item)
    vmem_limit = int(max(16 * _MIB, min(40 * _MIB, fp + 8 * _MIB), fp + 2 * _MIB))

    in_specs = [
        _spec((TN, Bt * D), lambda i, j: (j, i)),                            # u
        _spec((N, Bt * D), lambda i, j: (0, i), buffer_count=1),             # v (single-buffered)
        _spec((1, Bt * D), lambda i, j: (0, 0), buffer_count=1),             # gamma
        _spec((1, Bt * D), lambda i, j: (0, 0), buffer_count=1),             # beta
        _spec((TN, N), lambda i, j: (j, 0),
              buffer_count=1 if grid_n == 1 else None),                      # W
        _spec((TN, 1), lambda i, j: (j, 0),
              buffer_count=1 if grid_n == 1 else None),                      # bias
    ]
    out_spec = pl.BlockSpec((TN, Bt * D), lambda i, j: (j, i))

    cost = pl.CostEstimate(
        flops=int(2 * B * N * N * D + 10 * B * N * D),
        transcendentals=int(B * N * D + B * N),
        bytes_accessed=int(3 * B * N * D * item + grid_b * N * N * w_item
                           + N * 4 + 2 * D * 4),
    )

    out_s = pl.pallas_call(
        functools.partial(sgu_kernel, bt=Bt, d=D, use_slices=use_slices,
                          precision=precision),
        out_shape=jax.ShapeDtypeStruct((N, B * D), x.dtype),
        grid_spec=pltpu.PrefetchScalarGridSpec(
            num_scalar_prefetch=0,
            grid=(grid_b, grid_n),
            in_specs=in_specs,
            out_specs=out_spec,
            scratch_shapes=[pltpu.VMEM((N, Bt * D), mxu_dtype)],   # hoisted vn
        ),
        compiler_params=pltpu.CompilerParams(
            # i: independent batch tiles (megacore); j: carries the vn scratch,
            # so it must stay "arbitrary".  NOTE (v7x): if grid_b == 1 only one
            # TensorCore gets work — pick a batch_tile with grid_b >= 2 when B allows.
            dimension_semantics=("parallel", "arbitrary"),
            vmem_limit_bytes=vmem_limit,
        ),
        cost_estimate=cost,
    )(u_s, v_s, gamma_t, beta_t, w_mxu, bias2)

    # Un-stack: (N, B*D) -> (B, N, D).
    return out_s.reshape(N, B, D).transpose(1, 0, 2)


def reference(x, gamma, beta, w, bias):
    """Pure-JAX mirror of the PyTorch forward, for correctness checks."""
    D = x.shape[-1] // 2
    u, v = x[..., :D], x[..., D:]
    mean = jnp.mean(v, axis=-1, keepdims=True)
    var = jnp.mean((v - mean) ** 2, axis=-1, keepdims=True)
    vn = (v - mean) / jnp.sqrt(var + EPS) * gamma + beta
    vt = jnp.swapaxes(vn, -1, -2)                                   # (B, D, N)
    s = jnp.einsum("bdn,mn->bdm", vt, w,
                   precision=lax.Precision.HIGHEST) + bias          # Linear: x @ W.T + b
    g = jax.nn.sigmoid(s)
    return u * jnp.swapaxes(g, -1, -2)


if __name__ == "__main__":
    root = jax.random.PRNGKey(0)

    def run_case(case_id, B, N, D, *, mxu_dtype, row_tile=None, atol, rtol):
        ks = jax.random.split(jax.random.fold_in(root, case_id), 5)
        x = jax.random.normal(ks[0], (B, N, 2 * D), dtype=jnp.float32)
        gamma = 1.0 + 0.1 * jax.random.normal(ks[1], (D,), dtype=jnp.float32)
        beta = 0.1 * jax.random.normal(ks[2], (D,), dtype=jnp.float32)
        bound = 1.0 / float(N) ** 0.5
        w = jax.random.uniform(ks[3], (N, N), minval=-bound, maxval=bound,
                               dtype=jnp.float32)
        bias = jax.random.uniform(ks[4], (N,), minval=-bound, maxval=bound,
                                  dtype=jnp.float32)

        out = spatial_gating_unit(x, gamma, beta, w, bias,
                                  mxu_dtype=mxu_dtype, row_tile=row_tile)
        out = jax.block_until_ready(out)
        ref = reference(x, gamma, beta, w, bias)
        assert out.shape == (B, N, D), f"case {case_id}: bad shape {out.shape}"
        err = float(jnp.max(jnp.abs(out - ref)))
        assert jnp.allclose(out, ref, atol=atol, rtol=rtol), (
            f"case {case_id}: mismatch vs reference (max abs err {err})")

    # Case 0: module-sized shapes (dim=16, seq_len=8, batch=2), true-f32 MXU
    # (Precision.HIGHEST) — tight numerics check on the masked-LN path.
    run_case(0, B=2, N=8, D=16, mxu_dtype=jnp.float32, atol=1e-5, rtol=1e-5)
    # Case 1: same shape on the default bf16-MXU perf path.
    run_case(1, B=2, N=8, D=16, mxu_dtype=jnp.bfloat16, atol=5e-2, rtol=5e-2)
    # Case 2: lane-aligned dim (D=128), forced row tile (grid_n=2) and two batch
    # tiles — exercises the slice-LN path and the hoisted vn scratch carried
    # across the "arbitrary" j axis, plus megacore-parallel i.
    run_case(2, B=8, N=16, D=128, mxu_dtype=jnp.bfloat16, row_tile=8,
             atol=5e-2, rtol=5e-2)

    print("KERNEL_OK")
</pallas_src>

<mosaic_0001>
module attributes {stable_mosaic.version = 11 : i64} {
  func.func @sgu_kernel(%arg0: i32, %arg1: i32, %arg2: memref<8x32xf32, #tpu.memory_space<vmem>>, %arg3: memref<8x32xf32, #tpu.memory_space<vmem>>, %arg4: memref<1x32xf32, #tpu.memory_space<vmem>>, %arg5: memref<1x32xf32, #tpu.memory_space<vmem>>, %arg6: memref<8x8xf32, #tpu.memory_space<vmem>>, %arg7: memref<8x1xf32, #tpu.memory_space<vmem>>, %arg8: memref<8x32xf32, #tpu.memory_space<vmem>>, %arg9: memref<8x32xf32, #tpu.memory_space<vmem>>) attributes {dimension_semantics = [#tpu.dimension_semantics<parallel>, #tpu.dimension_semantics<arbitrary>], iteration_bounds = array<i64: 1, 1>, scalar_prefetch = 0 : i64, scratch_operands = 1 : i64, tpu.core_type = #tpu.core_type<tc>, window_params = [{transform_indices = @transform_0, window_bounds = array<i64: 8, 32>}, {pipeline_mode = #tpu.pipeline_mode<synchronous>, transform_indices = @transform_1, window_bounds = array<i64: 8, 32>}, {pipeline_mode = #tpu.pipeline_mode<synchronous>, transform_indices = @transform_2, window_bounds = array<i64: 1, 32>}, {pipeline_mode = #tpu.pipeline_mode<synchronous>, transform_indices = @transform_3, window_bounds = array<i64: 1, 32>}, {pipeline_mode = #tpu.pipeline_mode<synchronous>, transform_indices = @transform_4, window_bounds = array<i64: 8, 8>}, {pipeline_mode = #tpu.pipeline_mode<synchronous>, transform_indices = @transform_5, window_bounds = array<i64: 8, 1>}, {transform_indices = @transform_6, window_bounds = array<i64: 8, 32>}]} {
    %c0_i32 = arith.constant 0 : i32
    %0 = arith.cmpi eq, %arg1, %c0_i32 : i32
    %1 = arith.extui %0 : i1 to i32
    %c0_i32_0 = arith.constant 0 : i32
    %2 = arith.cmpi ne, %1, %c0_i32_0 : i32
    scf.if %2 {
      %c0_13 = arith.constant 0 : index
      %c0_14 = arith.constant 0 : index
      %19 = vector.load %arg3[%c0_13, %c0_14] : memref<8x32xf32, #tpu.memory_space<vmem>>, vector<8x32xf32>
      %20 = tpu.iota {dimensions = array<i32: 1>} : vector<8x32xi32>
      %cst_15 = arith.constant 0.000000e+00 : f32
      %21 = vector.broadcast %cst_15 : f32 to vector<8x32xf32>
      %c0_i32_16 = arith.constant 0 : i32
      %22 = vector.broadcast %c0_i32_16 : i32 to vector<8x32xi32>
      %23 = arith.cmpi sge, %20, %22 : vector<8x32xi32>
      %c16_i32 = arith.constant 16 : i32
      %24 = vector.broadcast %c16_i32 : i32 to vector<8x32xi32>
      %25 = arith.cmpi slt, %20, %24 : vector<8x32xi32>
      %26 = arith.andi %23, %25 : vector<8x32xi1>
      %cst_17 = arith.constant 0.000000e+00 : f32
      %27 = vector.broadcast %cst_17 : f32 to vector<8x32xf32>
      %28 = arith.select %26, %19, %27 : vector<8x32xi1>, vector<8x32xf32>
      %cst_18 = arith.constant dense<0.000000e+00> : vector<8xf32>
      %29 = vector.multi_reduction <add>, %28, %cst_18 [1] : vector<8x32xf32> to vector<8xf32>
      %30 = vector.shape_cast %29 : vector<8xf32> to vector<8x1xf32>
      %cst_19 = arith.constant 6.250000e-02 : f32
      %31 = vector.broadcast %cst_19 : f32 to vector<8x1xf32>
      %32 = arith.mulf %30, %31 : vector<8x1xf32>
      %33 = vector.broadcast %32 : vector<8x1xf32> to vector<8x32xf32>
      %34 = arith.subf %19, %33 : vector<8x32xf32>
      %cst_20 = arith.constant 0.000000e+00 : f32
      %35 = vector.broadcast %cst_20 : f32 to vector<8x32xf32>
      %36 = arith.select %26, %34, %35 : vector<8x32xi1>, vector<8x32xf32>
      %37 = arith.mulf %36, %36 : vector<8x32xf32>
      %cst_21 = arith.constant dense<0.000000e+00> : vector<8xf32>
      %38 = vector.multi_reduction <add>, %37, %cst_21 [1] : vector<8x32xf32> to vector<8xf32>
      %39 = vector.shape_cast %38 : vector<8xf32> to vector<8x1xf32>
      %cst_22 = arith.constant 6.250000e-02 : f32
      %40 = vector.broadcast %cst_22 : f32 to vector<8x1xf32>
      %41 = arith.mulf %39, %40 : vector<8x1xf32>
      %cst_23 = arith.constant 9.99999974E-6 : f32
      %42 = vector.broadcast %cst_23 : f32 to vector<8x1xf32>
      %43 = arith.addf %41, %42 : vector<8x1xf32>
      %44 = math.rsqrt %43 : vector<8x1xf32>
      %45 = vector.broadcast %44 : vector<8x1xf32> to vector<8x32xf32>
      %46 = arith.mulf %34, %45 : vector<8x32xf32>
      %47 = arith.select %26, %46, %21 : vector<8x32xi1>, vector<8x32xf32>
      %c16_i32_24 = arith.constant 16 : i32
      %48 = vector.broadcast %c16_i32_24 : i32 to vector<8x32xi32>
      %49 = arith.cmpi sge, %20, %48 : vector<8x32xi32>
      %c32_i32 = arith.constant 32 : i32
      %50 = vector.broadcast %c32_i32 : i32 to vector<8x32xi32>
      %51 = arith.cmpi slt, %20, %50 : vector<8x32xi32>
      %52 = arith.andi %49, %51 : vector<8x32xi1>
      %cst_25 = arith.constant 0.000000e+00 : f32
      %53 = vector.broadcast %cst_25 : f32 to vector<8x32xf32>
      %54 = arith.select %52, %19, %53 : vector<8x32xi1>, vector<8x32xf32>
      %cst_26 = arith.constant dense<0.000000e+00> : vector<8xf32>
      %55 = vector.multi_reduction <add>, %54, %cst_26 [1] : vector<8x32xf32> to vector<8xf32>
      %56 = vector.shape_cast %55 : vector<8xf32> to vector<8x1xf32>
      %cst_27 = arith.constant 6.250000e-02 : f32
      %57 = vector.broadcast %cst_27 : f32 to vector<8x1xf32>
      %58 = arith.mulf %56, %57 : vector<8x1xf32>
      %59 = vector.broadcast %58 : vector<8x1xf32> to vector<8x32xf32>
      %60 = arith.subf %19, %59 : vector<8x32xf32>
      %cst_28 = arith.constant 0.000000e+00 : f32
      %61 = vector.broadcast %cst_28 : f32 to vector<8x32xf32>
      %62 = arith.select %52, %60, %61 : vector<8x32xi1>, vector<8x32xf32>
      %63 = arith.mulf %62, %62 : vector<8x32xf32>
      %cst_29 = arith.constant dense<0.000000e+00> : vector<8xf32>
      %64 = vector.multi_reduction <add>, %63, %cst_29 [1] : vector<8x32xf32> to vector<8xf32>
      %65 = vector.shape_cast %64 : vector<8xf32> to vector<8x1xf32>
      %cst_30 = arith.constant 6.250000e-02 : f32
      %66 = vector.broadcast %cst_30 : f32 to vector<8x1xf32>
      %67 = arith.mulf %65, %66 : vector<8x1xf32>
      %cst_31 = arith.constant 9.99999974E-6 : f32
      %68 = vector.broadcast %cst_31 : f32 to vector<8x1xf32>
      %69 = arith.addf %67, %68 : vector<8x1xf32>
      %70 = math.rsqrt %69 : vector<8x1xf32>
      %71 = vector.broadcast %70 : vector<8x1xf32> to vector<8x32xf32>
      %72 = arith.mulf %60, %71 : vector<8x32xf32>
      %73 = arith.select %52, %72, %47 : vector<8x32xi1>, vector<8x32xf32>
      %c0_32 = arith.constant 0 : index
      %c0_33 = arith.constant 0 : index
      %74 = vector.load %arg4[%c0_32, %c0_33] : memref<1x32xf32, #tpu.memory_space<vmem>>, vector<1x32xf32>
      %75 = vector.broadcast %74 : vector<1x32xf32> to vector<8x32xf32>
      %76 = arith.mulf %73, %75 : vector<8x32xf32>
      %c0_34 = arith.constant 0 : index
      %c0_35 = arith.constant 0 : index
      %77 = vector.load %arg5[%c0_34, %c0_35] : memref<1x32xf32, #tpu.memory_space<vmem>>, vector<1x32xf32>
      %78 = vector.broadcast %77 : vector<1x32xf32> to vector<8x32xf32>
      %79 = arith.addf %76, %78 : vector<8x32xf32>
      %c0_36 = arith.constant 0 : index
      %c0_37 = arith.constant 0 : index
      %80 = vector.load %arg9[%c0_36, %c0_37] : memref<8x32xf32, #tpu.memory_space<vmem>>, vector<8x32xf32>
      tpu.vector_store %arg9[%c0_36, %c0_37], %79 {strides = array<i32>} : memref<8x32xf32, #tpu.memory_space<vmem>>, vector<8x32xf32>,
    } else {
    }
    %c0 = arith.constant 0 : index
    %c0_1 = arith.constant 0 : index
    %3 = vector.load %arg6[%c0, %c0_1] : memref<8x8xf32, #tpu.memory_space<vmem>>, vector<8x8xf32>
    %c0_2 = arith.constant 0 : index
    %c0_3 = arith.constant 0 : index
    %4 = vector.load %arg9[%c0_2, %c0_3] : memref<8x32xf32, #tpu.memory_space<vmem>>, vector<8x32xf32>
    %cst = arith.constant dense<0.000000e+00> : vector<8x32xf32>
    %5 = tpu.matmul %3, %4, %cst {dimension_numbers = #tpu.dot_dimension_numbers<[1], [0], [0], [1], [0, 0, 1, 1], [], []>, precision = #tpu.contract_precision<fp32>} : vector<8x8xf32>, vector<8x32xf32>, vector<8x32xf32> -> vector<8x32xf32>
    %c0_4 = arith.constant 0 : index
    %c0_5 = arith.constant 0 : index
    %6 = vector.load %arg7[%c0_4, %c0_5] : memref<8x1xf32, #tpu.memory_space<vmem>>, vector<8x1xf32>
    %7 = vector.broadcast %6 : vector<8x1xf32> to vector<8x32xf32>
    %8 = arith.addf %5, %7 : vector<8x32xf32>
    %cst_6 = arith.constant 5.000000e-01 : f32
    %9 = vector.broadcast %cst_6 : f32 to vector<8x32xf32>
    %10 = arith.mulf %9, %8 : vector<8x32xf32>
    %11 = math.tanh %10 : vector<8x32xf32>
    %cst_7 = arith.constant 1.000000e+00 : f32
    %12 = vector.broadcast %cst_7 : f32 to vector<8x32xf32>
    %13 = arith.addf %11, %12 : vector<8x32xf32>
    %cst_8 = arith.constant 5.000000e-01 : f32
    %14 = vector.broadcast %cst_8 : f32 to vector<8x32xf32>
    %15 = arith.mulf %14, %13 : vector<8x32xf32>
    %c0_9 = arith.constant 0 : index
    %c0_10 = arith.constant 0 : index
    %16 = vector.load %arg2[%c0_9, %c0_10] : memref<8x32xf32, #tpu.memory_space<vmem>>, vector<8x32xf32>
    %17 = arith.mulf %16, %15 : vector<8x32xf32>
    %c0_11 = arith.constant 0 : index
    %c0_12 = arith.constant 0 : index
    %18 = vector.load %arg8[%c0_11, %c0_12] : memref<8x32xf32, #tpu.memory_space<vmem>>, vector<8x32xf32>
    tpu.vector_store %arg8[%c0_11, %c0_12], %17 {strides = array<i32>} : memref<8x32xf32, #tpu.memory_space<vmem>>, vector<8x32xf32>,
    return
  }
  func.func @transform_0(%arg0: i32, %arg1: i32) -> (i32, i32) {
    %c0_i32 = arith.constant 0 : i32
    return %arg1, %arg0 : i32, i32
  }
  func.func @transform_1(%arg0: i32, %arg1: i32) -> (i32, i32) {
    %c0_i32 = arith.constant 0 : i32
    %c0_i32_0 = arith.constant 0 : i32
    return %c0_i32, %arg0 : i32, i32
  }
  func.func @transform_2(%arg0: i32, %arg1: i32) -> (i32, i32) {
    %c0_i32 = arith.constant 0 : i32
    %c0_i32_0 = arith.constant 0 : i32
    %c0_i32_1 = arith.constant 0 : i32
    return %c0_i32, %c0_i32_0 : i32, i32
  }
  func.func @transform_3(%arg0: i32, %arg1: i32) -> (i32, i32) {
    %c0_i32 = arith.constant 0 : i32
    %c0_i32_0 = arith.constant 0 : i32
    %c0_i32_1 = arith.constant 0 : i32
    return %c0_i32, %c0_i32_0 : i32, i32
  }
  func.func @transform_4(%arg0: i32, %arg1: i32) -> (i32, i32) {
    %c0_i32 = arith.constant 0 : i32
    %c0_i32_0 = arith.constant 0 : i32
    return %arg1, %c0_i32 : i32, i32
  }
  func.func @transform_5(%arg0: i32, %arg1: i32) -> (i32, i32) {
    %c0_i32 = arith.constant 0 : i32
    %c0_i32_0 = arith.constant 0 : i32
    return %arg1, %c0_i32 : i32, i32
  }
  func.func @transform_6(%arg0: i32, %arg1: i32) -> (i32, i32) {
    %c0_i32 = arith.constant 0 : i32
    return %arg1, %arg0 : i32, i32
  }
}

</mosaic_0001>

<llo_original>
// kernel: tpu_custom_call.1
$region0: #{tpu_custom_call.1}
  #allocation0 [shape = 'u32[]', space=smem, size = 0x4, offset = 0x4, fixed_abs, tag = 'smem constant byte address 0x4 - core index']
  #allocation1 [shape = 'u32[72,128]{1,0:T(1,128)}', space=vmem, size = 0x9000, scoped, tag = 'internal scratch']
  #allocation2 [shape = 'f32[8,32]{1,0:T(8,128)}', space=vmem, size = 0x1000, scoped, tag = 'scratch operand']
  %s0 = inlined_call_operand.vmem [shape: f32[8,32], index: 0, kind: input, shape index: {}]
  %s1 = inlined_call_operand.hbm [shape: f32[8,32], index: 1, kind: input, shape index: {}]
  %s2 = inlined_call_operand.vmem [shape: f32[1,32], index: 2, kind: input, shape index: {}]
  %s3 = inlined_call_operand.vmem [shape: f32[1,32], index: 3, kind: input, shape index: {}]
  %s4 = inlined_call_operand.hbm [shape: f32[8,8], index: 4, kind: input, shape index: {}]
  %s5 = inlined_call_operand.vmem [shape: f32[8,1], index: 5, kind: input, shape index: {}]
  %s6 = inlined_call_operand.hbm [shape: f32[8,32], index: 6, kind: output, shape index: {}]
  %s7 = sld [smem:[#allocation0]]
  $region46: #{tpu_custom_call.1} parent=0
    _
  %s9 = ssub.s32 1, %s7
  %s10 = scalar_select 0, %s9, %s7
  $region1: #{tpu_custom_call.1} parent=0
    #allocation3 [shape = 'u8[4096]{0}', space=vmem, size = 0x1000, scoped, tag = 'input window, operand 1, single buffered']
    #allocation4 [shape = 's32[1]{0}', space=sflag, size = 0x4, scoped, tag = 'scoped memory for tpu_custom_call.1']
    #allocation5 [shape = 's32[1]{0}', space=sflag, size = 0x4, scoped, tag = 'scoped memory for tpu_custom_call.1']
    #allocation6 [shape = 'u8[4096]{0}', space=vmem, size = 0x1000, scoped, tag = 'input window, operand 4, single buffered']
    #allocation7 [shape = 's32[1]{0}', space=sflag, size = 0x4, scoped, tag = 'scoped memory for tpu_custom_call.1']
    #allocation8 [shape = 'u8[4096]{0}', space=vmem, size = 0x1000, scoped, tag = 'output window, operand 0, single buffered']
    %11 = vsyncpa [#allocation4], 0
    %12 = vsyncpa [#allocation7], 0
    %13 = vsyncpa [#allocation5], 0
    // Predicated region
    $region2: #{tpu_custom_call.1} parent=1 // pred_check
      _
    $region3: #{tpu_custom_call.1} parent=1 // pred_check_branch
      %15 = sbr.rel (0) target = $region5
    $region4: #{tpu_custom_call.1} parent=1 // pred_region
      _
    $region5: #{tpu_custom_call.1} parent=1 // pred_fallthru
      _
    // Predicated region
    $region6: #{tpu_custom_call.1} parent=1 // pred_check
      _
    $region7: #{tpu_custom_call.1} parent=1 // pred_check_branch
      %17 = sbr.rel (0) target = $region9
    $region8: #{tpu_custom_call.1} parent=1 // pred_region
      %19 = vsyncadd [#allocation4], 0
      %s21 = sshll.u32 %s1, 4
      %s22 = int_to_ptr.hbm [resolvable:$true] %s21
      %s23 = sshll.u32 [#allocation3], 4
      %s24 = int_to_ptr.vmem [resolvable:$true] %s23
      %26 = dma.hbm_to_vmem [thread:$0]  %s22, 128, %s24, [#allocation4]
    $region9: #{tpu_custom_call.1} parent=1 // pred_fallthru
      _
    // Predicated region
    $region10: #{tpu_custom_call.1} parent=1 // pred_check
      _
    $region11: #{tpu_custom_call.1} parent=1 // pred_check_branch
      %28 = sbr.rel (0) target = $region13
    $region12: #{tpu_custom_call.1} parent=1 // pred_region
      _
    $region13: #{tpu_custom_call.1} parent=1 // pred_fallthru
      _
    // Predicated region
    $region14: #{tpu_custom_call.1} parent=1 // pred_check
      _
    $region15: #{tpu_custom_call.1} parent=1 // pred_check_branch
      %30 = sbr.rel (0) target = $region17
    $region16: #{tpu_custom_call.1} parent=1 // pred_region
      _
    $region17: #{tpu_custom_call.1} parent=1 // pred_fallthru
      _
    // Predicated region
    $region18: #{tpu_custom_call.1} parent=1 // pred_check
      _
    $region19: #{tpu_custom_call.1} parent=1 // pred_check_branch
      %32 = sbr.rel (0) target = $region21
    $region20: #{tpu_custom_call.1} parent=1 // pred_region
      %34 = vsyncadd [#allocation7], 0
      %s36 = sshll.u32 %s4, 4
      %s37 = int_to_ptr.hbm [resolvable:$true] %s36
      %s38 = sshll.u32 [#allocation6], 4
      %s39 = int_to_ptr.vmem [resolvable:$true] %s38
      %41 = dma.hbm_to_vmem [thread:$0]  %s37, 128, %s39, [#allocation7]
    $region21: #{tpu_custom_call.1} parent=1 // pred_fallthru
      _
    // Predicated region
    $region22: #{tpu_custom_call.1} parent=1 // pred_check
      _
    $region23: #{tpu_custom_call.1} parent=1 // pred_check_branch
      %43 = sbr.rel (0) target = $region25
    $region24: #{tpu_custom_call.1} parent=1 // pred_region
      _
    $region25: #{tpu_custom_call.1} parent=1 // pred_fallthru
      _
    // Predicated region
    $region26: #{tpu_custom_call.1} parent=1 // pred_check
      _
    $region27: #{tpu_custom_call.1} parent=1 // pred_check_branch
      %45 = sbr.rel (0) target = $region29
    $region28: #{tpu_custom_call.1} parent=1 // pred_region
      %47 = dma.done [#allocation4], 128
    $region29: #{tpu_custom_call.1} parent=1 // pred_fallthru
      _
    // Predicated region
    $region30: #{tpu_custom_call.1} parent=1 // pred_check
      _
    $region31: #{tpu_custom_call.1} parent=1 // pred_check_branch
      %49 = sbr.rel (0) target = $region33
    $region32: #{tpu_custom_call.1} parent=1 // pred_region
      %51 = dma.done [#allocation7], 128
    $region33: #{tpu_custom_call.1} parent=1 // pred_fallthru
      _
    %p52 = scmp.eq.s32.totalorder 0, 0
    // Predicated region
    $region34: #{tpu_custom_call.1} parent=1 // pred_check
      %p53 = pneg %p52
    $region35: #{tpu_custom_call.1} parent=1 // pred_check_branch
      %55 = sbr.rel (%p53) target = $region37
    $region36: #{tpu_custom_call.1} parent=1 // pred_region
      %v56 = vld [vmem:[#allocation3] sm:$0xff]
      %v57 = vlaneseq
      %v58 = vand.u32 %v57, 127
      %vm59 = vcmp.ge.s32.totalorder %v58, 0
      %vm60 = vcmp.lt.s32.totalorder %v58, 16
      %vm61 = vmand %vm59, %vm60
      %v62 = vsel %vm61, %v56, 0.0
      %vm63 = vcmask 261120
      %v64 = vsel %vm63, %v62, 0.0
      %65 = vadd.xlane.f32.xlu0 %v64
      %v66 = vpop.xlane.xlu0 %65
      %v67 = vmul.f32 %v66, 0.0625
      %v68 = vsub.f32 %v56, %v67
      %v69 = vsel %vm61, %v68, 0.0
      %v70 = vmul.f32 %v69, %v69
      %v71 = vsel %vm63, %v70, 0.0
      %72 = vadd.xlane.f32.xlu0 %v71
      %v73 = vpop.xlane.xlu0 %72
      %v74 = vmul.f32 %v73, 0.0625
      %v75 = vadd.f32 %v74, 1e-05
      %v76 = vrsqrt.pop %v75
      %v77 = vmul.f32 %v76, %v75
      %v78 = vmul.f32 %v77, %v76
      %v79 = vmul.f32 0.5, %v78
      %v80 = vsub.f32 1.5, %v79
      %v81 = vmul.f32 %v76, %v80
      %vm82 = vweird.f32 %v75
      %vm83 = vweird.f32 %v76
      %vm84 = vmor %vm82, %vm83
      %v85 = vsel %vm84, %v76, %v81
      %v86 = vmul.f32 %v68, %v85
      %v87 = vsel %vm61, %v86, 0.0
      %vm88 = vcmp.ge.s32.totalorder %v58, 16
      %vm89 = vcmp.lt.s32.totalorder %v58, 32
      %vm90 = vmand %vm88, %vm89
      %v91 = vsel %vm90, %v56, 0.0
      %v92 = vsel %vm63, %v91, 0.0
      %93 = vadd.xlane.f32.xlu0 %v92
      %v94 = vpop.xlane.xlu0 %93
      %v95 = vmul.f32 %v94, 0.0625
      %v96 = vsub.f32 %v56, %v95
      %v97 = vsel %vm90, %v96, 0.0
      %v98 = vmul.f32 %v97, %v97
      %v99 = vsel %vm63, %v98, 0.0
      %100 = vadd.xlane.f32.xlu0 %v99
      %v101 = vpop.xlane.xlu0 %100
      %v102 = vmul.f32 %v101, 0.0625
      %v103 = vadd.f32 %v102, 1e-05
      %v104 = vrsqrt.pop %v103
      %v105 = vmul.f32 %v104, %v103
      %v106 = vmul.f32 %v105, %v104
      %v107 = vmul.f32 0.5, %v106
      %v108 = vsub.f32 1.5, %v107
      %v109 = vmul.f32 %v104, %v108
      %vm110 = vweird.f32 %v103
      %vm111 = vweird.f32 %v104
      %vm112 = vmor %vm110, %vm111
      %v113 = vsel %vm112, %v104, %v109
      %v114 = vmul.f32 %v96, %v113
      %v115 = vsel %vm90, %v114, %v87
      %v116 = vld [vmem:[%s2] sm:$0x1]
      %v118 = vperm.slane %v116, 0
      %v120 = vmul.f32 %v115, %v118
      %v121 = vld [vmem:[%s3] sm:$0x1]
      %v123 = vperm.slane %v121, 0
      %v125 = vadd.f32 %v120, %v123
      %126 = vst.msk [vmem:[#allocation2] sm:$0xff] %vm63, %v125
    $region37: #{tpu_custom_call.1} parent=1 // pred_fallthru
      _
    %v127 = vld [vmem:[#allocation6] sm:$0xff]
    %v128 = vld [vmem:[#allocation2] sm:$0xff]
    %v129 = vld [vmem:[%s5] sm:$0xff]
    %131 = vset.pattern.permute.xlu0 0
    %132 = vperm.xlu0 %131, %v129
    %v133 = vpop.permute.xlu0 %132
    %vm135 = vcmask 64512
    %v137 = vsel %vm135, %v127, 0
    %139 = vmatpush.msra.mxu0 0.0
    %140 = vmatpush.msra.mxu0 0.0
    %141 = vmatpush.msra.mxu0 0.0
    %142 = vmatpush.msra.mxu0 0.0
    %143 = vmatpush.msra.mxu0 0.0
    %144 = vmatpush.msra.mxu0 0.0
    %145 = vmatpush.msra.mxu0 0.0
    %146 = vmatpush.msra.mxu0 0.0
    %147 = vmatpush.msra.mxu0 0.0
    %148 = vmatpush.msra.mxu0 0.0
    %149 = vmatpush.msra.mxu0 0.0
    %150 = vmatpush.msra.mxu0 0.0
    %151 = vmatpush.msra.mxu0 0.0
    %152 = vmatpush.msra.mxu0 0.0
    %153 = vmatpush.msra.mxu0 0.0
    %v154 = vand.u32 %v128, 4294901760
    %155 = vmatpush.msra.mxu0 %v154
    %v156 = vand.u32 %v137, 4294901760
    %v157 = vsub.f32 %v137, %v156
    %v158 = vand.u32 %v157, 4294901760
    %v159 = vsub.f32 %v157, %v158
    %v160 = vand.u32 %v159, 4294901760
    %161 = vmatmul.f32.gmra.mxu0 %v160
    %v162 = vpop.f32.mrf.mxu0
    %v163 = vadd.f32 %v133, %v162
    %164 = vdwg.mxu0
    %165 = vmatpush.msra.mxu0 0.0
    %166 = vmatpush.msra.mxu0 0.0
    %167 = vmatpush.msra.mxu0 0.0
    %168 = vmatpush.msra.mxu0 0.0
    %169 = vmatpush.msra.mxu0 0.0
    %170 = vmatpush.msra.mxu0 0.0
    %171 = vmatpush.msra.mxu0 0.0
    %172 = vmatpush.msra.mxu0 0.0
    %173 = vmatpush.msra.mxu0 0.0
    %174 = vmatpush.msra.mxu0 0.0
    %175 = vmatpush.msra.mxu0 0.0
    %176 = vmatpush.msra.mxu0 0.0
    %177 = vmatpush.msra.mxu0 0.0
    %178 = vmatpush.msra.mxu0 0.0
    %179 = vmatpush.msra.mxu0 0.0
    %v180 = vand.u32 %v128, 4294901760
    %v181 = vsub.f32 %v128, %v180
    %v182 = vand.u32 %v181, 4294901760
    %v183 = vsub.f32 %v181, %v182
    %v184 = vand.u32 %v183, 4294901760
    %185 = vmatpush.msra.mxu0 %v184
    %v186 = vand.u32 %v137, 4294901760
    %187 = vmatmul.f32.gmra.mxu0 %v186
    %v188 = vpop.f32.mrf.mxu0
    %v189 = vadd.f32 %v163, %v188
    %190 = vdwg.mxu0
    %191 = vmatpush.msra.mxu0 0.0
    %192 = vmatpush.msra.mxu0 0.0
    %193 = vmatpush.msra.mxu0 0.0
    %194 = vmatpush.msra.mxu0 0.0
    %195 = vmatpush.msra.mxu0 0.0
    %196 = vmatpush.msra.mxu0 0.0
    %197 = vmatpush.msra.mxu0 0.0
    %198 = vmatpush.msra.mxu0 0.0
    %199 = vmatpush.msra.mxu0 0.0
    %200 = vmatpush.msra.mxu0 0.0
    %201 = vmatpush.msra.mxu0 0.0
    %202 = vmatpush.msra.mxu0 0.0
    %203 = vmatpush.msra.mxu0 0.0
    %204 = vmatpush.msra.mxu0 0.0
    %205 = vmatpush.msra.mxu0 0.0
    %v206 = vand.u32 %v128, 4294901760
    %v207 = vsub.f32 %v128, %v206
    %208 = vmatpush.msra.mxu0 %v207
    %v209 = vand.u32 %v137, 4294901760
    %v210 = vsub.f32 %v137, %v209
    %211 = vmatmul.f32.gmra.mxu0 %v210
    %v212 = vpop.f32.mrf.mxu0
    %v213 = vadd.f32 %v189, %v212
    %214 = vdwg.mxu0
    %215 = vmatpush.msra.mxu0 0.0
    %216 = vmatpush.msra.mxu0 0.0
    %217 = vmatpush.msra.mxu0 0.0
    %218 = vmatpush.msra.mxu0 0.0
    %219 = vmatpush.msra.mxu0 0.0
    %220 = vmatpush.msra.mxu0 0.0
    %221 = vmatpush.msra.mxu0 0.0
    %222 = vmatpush.msra.mxu0 0.0
    %223 = vmatpush.msra.mxu0 0.0
    %224 = vmatpush.msra.mxu0 0.0
    %225 = vmatpush.msra.mxu0 0.0
    %226 = vmatpush.msra.mxu0 0.0
    %227 = vmatpush.msra.mxu0 0.0
    %228 = vmatpush.msra.mxu0 0.0
    %229 = vmatpush.msra.mxu0 0.0
    %v230 = vand.u32 %v128, 4294901760
    %231 = vmatpush.msra.mxu0 %v230
    %v232 = vand.u32 %v137, 4294901760
    %v233 = vsub.f32 %v137, %v232
    %v234 = vand.u32 %v233, 4294901760
    %235 = vmatmul.f32.gmra.mxu0 %v234
    %v236 = vpop.f32.mrf.mxu0
    %v237 = vadd.f32 %v213, %v236
    %238 = vdwg.mxu0
    %239 = vmatpush.msra.mxu0 0.0
    %240 = vmatpush.msra.mxu0 0.0
    %241 = vmatpush.msra.mxu0 0.0
    %242 = vmatpush.msra.mxu0 0.0
    %243 = vmatpush.msra.mxu0 0.0
    %244 = vmatpush.msra.mxu0 0.0
    %245 = vmatpush.msra.mxu0 0.0
    %246 = vmatpush.msra.mxu0 0.0
    %247 = vmatpush.msra.mxu0 0.0
    %248 = vmatpush.msra.mxu0 0.0
    %249 = vmatpush.msra.mxu0 0.0
    %250 = vmatpush.msra.mxu0 0.0
    %251 = vmatpush.msra.mxu0 0.0
    %252 = vmatpush.msra.mxu0 0.0
    %253 = vmatpush.msra.mxu0 0.0
    %v254 = vand.u32 %v128, 4294901760
    %v255 = vsub.f32 %v128, %v254
    %v256 = vand.u32 %v255, 4294901760
    %257 = vmatpush.msra.mxu0 %v256
    %v258 = vand.u32 %v137, 4294901760
    %259 = vmatmul.f32.gmra.mxu0 %v258
    %v260 = vpop.f32.mrf.mxu0
    %v261 = vadd.f32 %v237, %v260
    %262 = vdwg.mxu0
    %263 = vmatpush.msra.mxu0 0.0
    %264 = vmatpush.msra.mxu0 0.0
    %265 = vmatpush.msra.mxu0 0.0
    %266 = vmatpush.msra.mxu0 0.0
    %267 = vmatpush.msra.mxu0 0.0
    %268 = vmatpush.msra.mxu0 0.0
    %269 = vmatpush.msra.mxu0 0.0
    %270 = vmatpush.msra.mxu0 0.0
    %271 = vmatpush.msra.mxu0 0.0
    %272 = vmatpush.msra.mxu0 0.0
    %273 = vmatpush.msra.mxu0 0.0
    %274 = vmatpush.msra.mxu0 0.0
    %275 = vmatpush.msra.mxu0 0.0
    %276 = vmatpush.msra.mxu0 0.0
    %277 = vmatpush.msra.mxu0 0.0
    %v278 = vand.u32 %v128, 4294901760
    %279 = vmatpush.msra.mxu0 %v278
    %v280 = vand.u32 %v137, 4294901760
    %281 = vmatmul.f32.gmra.mxu0 %v280
    %v282 = vpop.f32.mrf.mxu0
    %v283 = vadd.f32 %v261, %v282
    %284 = vdwg.mxu0
    %v285 = vmul.f32 %v283, 0.5
    %v286 = vtanh.pop %v285
    %v287 = vadd.f32 %v286, 1.0
    %v288 = vmul.f32 %v287, 0.5
    %v289 = vld [vmem:[%s0] sm:$0xff]
    %v290 = vmul.f32 %v289, %v288
    %vm291 = vcmask 261120
    %292 = vst.msk [vmem:[#allocation8] sm:$0xff] %vm291, %v290
    // Predicated region
    $region38: #{tpu_custom_call.1} parent=1 // pred_check
      _
    $region39: #{tpu_custom_call.1} parent=1 // pred_check_branch
      %294 = sbr.rel (0) target = $region41
    $region40: #{tpu_custom_call.1} parent=1 // pred_region
      %296 = vsyncadd [#allocation5], 0
      %s298 = sshll.u32 [#allocation8], 4
      %s299 = int_to_ptr.vmem [resolvable:$true] %s298
      %s300 = sshll.u32 %s6, 4
      %s301 = int_to_ptr.hbm [resolvable:$true] %s300
      %303 = dma.vmem_to_hbm [thread:$0]  %s299, 128, %s301, [#allocation5]
    $region41: #{tpu_custom_call.1} parent=1 // pred_fallthru
      _
    // Predicated region
    $region42: #{tpu_custom_call.1} parent=1 // pred_check
      _
    $region43: #{tpu_custom_call.1} parent=1 // pred_check_branch
      %305 = sbr.rel (0) target = $region45
    $region44: #{tpu_custom_call.1} parent=1 // pred_region
      %307 = dma.done [#allocation5], 128
    $region45: #{tpu_custom_call.1} parent=1 // pred_fallthru
      _
    %308 = vsyncpa [#allocation4], 1
    %309 = vsyncpa [#allocation7], 1
    %310 = vsyncpa [#allocation5], 1

</llo_original>
